<compile_context>
chip_gen: v7x
topology: tpu7x:2x2x1
jax: 0.10.0
libtpu: 0.0.40
codegen_flags: <defaults>
</compile_context>

<pallas_src>
import functools

import jax
import jax.numpy as jnp
from jax.experimental import pallas as pl
from jax.experimental.pallas import tpu as pltpu


# ----------------------------------------------------------------------------
# Kernel
# ----------------------------------------------------------------------------
def _global_attn_kernel(enc_ref, dproj_ref, dec_ref, woc_ref, wod_ref,
                        out_ref, attn_ref, ctx_ref, *, bt, lout):
    """Grid = (batch-blocks, Lin-chunks). Per step:
         enc_ref  : (bt, tLin, H)     bf16  (streamed over Lin chunks)
         dproj_ref: (bt, Lout, H)     bf16  (hoisted d_proj, resident over k)
         dec_ref  : (bt, Lout, H)     bf16  (resident over k)
         woc/wod  : (H, H)            bf16  (linear_out halves, pre-transposed)
         out_ref  : (bt*Lout, H)            (resident; written at last chunk)
         attn_ref : (bt*Lout, tLin)         (lane-dense 2-D slab, streamed out)
         ctx_ref  : (bt, Lout, H)     f32   scratch (context accumulator)
    """
    k = pl.program_id(1)
    nk = pl.num_programs(1)

    @pl.when(k == 0)
    def _init():
        ctx_ref[...] = jnp.zeros_like(ctx_ref)

    enc = enc_ref[...]                                        # (bt, tLin, H) bf16

    # score = d_proj @ enc^T per batch element (flash-style QK^T on the MXU,
    # f32 accumulation).
    score = jnp.einsum('bld,bkd->blk', dproj_ref[...], enc,
                       preferred_element_type=jnp.float32)    # (bt, Lout, tLin)
    attn = jax.nn.sigmoid(score)                              # f32 (EUP path)

    # Single lane-dense store of the whole block's attention chunk.
    t_lin = attn.shape[-1]
    attn_ref[...] = attn.reshape(bt * lout, t_lin).astype(attn_ref.dtype)

    # context += attn @ enc  (exact chunked accumulation in f32; zero-padded
    # encoder rows contribute exactly 0).
    ctx_ref[...] += jnp.einsum('blk,bkh->blh', attn.astype(jnp.bfloat16), enc,
                               preferred_element_type=jnp.float32)

    @pl.when(k == nk - 1)
    def _finalize():
        h = out_ref.shape[-1]
        # linear_out(concat([ctx, dec])) == ctx @ Woc.T + dec @ Wod.T, fused
        # over the batch block, then tanh in f32.
        ctx_bf = ctx_ref[...].astype(jnp.bfloat16).reshape(bt * lout, h)
        dec_bf = dec_ref[...].reshape(bt * lout, h)
        pre = (jnp.dot(ctx_bf, woc_ref[...], preferred_element_type=jnp.float32)
               + jnp.dot(dec_bf, wod_ref[...], preferred_element_type=jnp.float32))
        out_ref[...] = jnp.tanh(pre).astype(out_ref.dtype)


# ----------------------------------------------------------------------------
# Tiling heuristics
# ----------------------------------------------------------------------------
def _round_up(x, m):
    return (x + m - 1) // m * m


def _vmem_budget_bytes():
    # Generation-aware budget: ~75% of physical VMEM (128 MiB on v5e/v6e,
    # 64 MiB per TC on v7x).  Falls back to a v7x-safe value.
    cap = 64 * 1024 * 1024
    try:
        info = pltpu.get_tpu_info()
        cap = int(getattr(info, "vmem_capacity_bytes", cap)) or cap
    except Exception:
        pass
    return max(32 * 1024 * 1024, (cap * 3) // 4)


def _estimate_vmem_bytes(bt, lout, t_lin, h, out_itemsize, attn_itemsize):
    # Rough padded estimate of per-step VMEM with double-buffered pipelining.
    h_l = _round_up(h, 128)
    rows = _round_up(bt * lout, 8)
    lout16 = _round_up(lout, 16)
    enc = bt * t_lin * h_l * 2                      # bf16 streamed tile
    dproj = bt * lout16 * h_l * 2                   # bf16 resident
    dec = bt * lout16 * h_l * 2                     # bf16 resident
    wts = 2 * _round_up(h, 16) * h_l * 2            # bf16 weights
    out = rows * h_l * out_itemsize
    attn = rows * t_lin * attn_itemsize
    ctx = bt * _round_up(lout, 8) * h_l * 4         # f32 scratch (single copy)
    est = 2 * (enc + dproj + dec + wts + out + attn) + ctx
    return int(est * 1.4)                           # headroom for temporaries


def _pick_batch_block(batch, lout, target_rows=512):
    # Largest divisor of `batch` whose fused row count (bt*Lout) fits the MXU
    # target and keeps the fused block sublane-aligned.  Prefer leaving >= 2
    # batch blocks so the "parallel" grid axis can feed both v7x TensorCores
    # (no-op on single-TC v5e/v6e).
    divs = [c for c in range(1, batch + 1) if batch % c == 0]

    def aligned(c):
        return c == batch or (c * lout) % 8 == 0

    for allow_full in (False, True):
        cands = [c for c in divs
                 if aligned(c) and c * lout <= target_rows
                 and (allow_full or c <= max(1, batch // 2))]
        if cands:
            return max(cands)
    aligned_divs = [c for c in divs if aligned(c)]
    return min(aligned_divs) if aligned_divs else batch


def _pick_lin_tile(lin, t_max):
    # Largest multiple-of-128 tile <= t_max whose padded extent adds at most
    # ~12.5% zero columns over the 128-aligned length (exact divisors add 0%).
    lin128 = _round_up(lin, 128)
    n = lin128 // 128
    m_max = max(1, min(t_max // 128, n))
    for m in range(m_max, 0, -1):
        t = 128 * m
        padded = _round_up(lin128, t)
        if padded - lin128 <= lin128 // 8:
            return t, padded
    return 128, lin128


def _select_tiling(batch, lin, lout, h, out_itemsize, attn_itemsize):
    budget = _vmem_budget_bytes()
    bt = _pick_batch_block(batch, lout)
    t_max = 128
    for cand in (1024, 512, 256, 128):
        if _estimate_vmem_bytes(bt, lout, cand, h,
                                out_itemsize, attn_itemsize) <= budget:
            t_max = cand
            break
    t_lin, lin_pad = _pick_lin_tile(lin, t_max)
    est = _estimate_vmem_bytes(bt, lout, t_lin, h, out_itemsize, attn_itemsize)
    vmem_limit = int(min(budget, max(est, 32 * 1024 * 1024)))
    return bt, t_lin, lin_pad, vmem_limit


# ----------------------------------------------------------------------------
# Wrapper
# ----------------------------------------------------------------------------
def global_attention_general(encoder_outputs, decoder_outputs,
                             w_general, w_linear_out,
                             attn_dtype=jnp.float32):
    """
    encoder_outputs: [B, Lin, H]  float32
    decoder_outputs: [B, Lout, H] float32
    w_general:       [H, H]   (nn.Linear(H, H, bias=False).weight)
    w_linear_out:    [H, 2H]  (nn.Linear(2H, H, bias=False).weight)
    returns (new_decoder_outputs [B, Lout, H], attn_dis [B, Lout, Lin])
    """
    B, Lin, H = encoder_outputs.shape
    Bd, Lout, Hd = decoder_outputs.shape
    assert Bd == B and Hd == H
    assert w_general.shape == (H, H)
    assert w_linear_out.shape == (H, 2 * H)

    out_dtype = decoder_outputs.dtype
    out_itemsize = jnp.dtype(out_dtype).itemsize
    attn_itemsize = jnp.dtype(attn_dtype).itemsize

    bt, t_lin, lin_pad, vmem_limit = _select_tiling(
        B, Lin, Lout, H, out_itemsize, attn_itemsize)
    n_b = B // bt
    n_k = lin_pad // t_lin

    # ---- one-time HBM-side prep (plain XLA ops) ----------------------------
    # Weights: split linear_out into [ctx | dec] halves, transpose, bf16.
    wg_t = w_general.T.astype(jnp.bfloat16)               # (H, H) = Wg.T
    woc_t = w_linear_out[:, :H].T.astype(jnp.bfloat16)    # (H, H) ctx half .T
    wod_t = w_linear_out[:, H:].T.astype(jnp.bfloat16)    # (H, H) dec half .T

    # Encoder/decoder streamed as bf16 (kernel only ever uses the bf16 view;
    # f32 accumulation stays inside the kernel).  Encoder zero-padded along
    # Lin: sigmoid(score)*0 contributes exactly 0 to the context; the padded
    # attention columns are sliced off below.
    dec_bf = decoder_outputs.astype(jnp.bfloat16)                      # (B, Lout, H)
    enc_bf = encoder_outputs.astype(jnp.bfloat16)                      # (B, Lin, H)
    if lin_pad != Lin:
        enc_bf = jnp.pad(enc_bf, ((0, 0), (0, lin_pad - Lin), (0, 0)))

    # Hoisted d_proj = decoder @ Wg.T: one full-M (B*Lout) GEMM in XLA,
    # f32 accumulation, bf16 result (matches the kernel's MXU feed precision).
    dproj = jnp.einsum('blh,hd->bld', dec_bf, wg_t,
                       preferred_element_type=jnp.float32).astype(jnp.bfloat16)

    out_shapes = (
        jax.ShapeDtypeStruct((B * Lout, H), out_dtype),
        jax.ShapeDtypeStruct((B * Lout, lin_pad), attn_dtype),
    )

    grid_spec = pltpu.PrefetchScalarGridSpec(
        num_scalar_prefetch=0,
        grid=(n_b, n_k),
        in_specs=[
            pl.BlockSpec((bt, t_lin, H), lambda i, k: (i, k, 0)),     # encoder (streamed)
            pl.BlockSpec((bt, Lout, H), lambda i, k: (i, 0, 0)),      # d_proj (resident)
            pl.BlockSpec((bt, Lout, H), lambda i, k: (i, 0, 0)),      # decoder (resident)
            pl.BlockSpec((H, H), lambda i, k: (0, 0)),                # Wout ctx-half.T
            pl.BlockSpec((H, H), lambda i, k: (0, 0)),                # Wout dec-half.T
        ],
        out_specs=[
            pl.BlockSpec((bt * Lout, H), lambda i, k: (i, 0)),        # new_dec (resident over k)
            pl.BlockSpec((bt * Lout, t_lin), lambda i, k: (i, k)),    # attn (lane-dense 2-D)
        ],
        scratch_shapes=[
            pltpu.VMEM((bt, Lout, H), jnp.float32),                   # ctx accumulator
        ],
    )

    # Advisory cost estimate for XLA scheduling of surrounding ops.
    flops = 4 * B * Lout * lin_pad * H + 4 * B * Lout * H * H
    transcendentals = B * Lout * (lin_pad + H)
    bytes_accessed = (B * lin_pad * H * 2          # encoder bf16
                      + 2 * B * Lout * H * 2       # d_proj + decoder bf16
                      + 2 * H * H * 2              # weights bf16
                      + B * Lout * H * out_itemsize
                      + B * Lout * lin_pad * attn_itemsize)

    kernel = functools.partial(_global_attn_kernel, bt=bt, lout=Lout)

    out2d, attn2d = pl.pallas_call(
        kernel,
        out_shape=out_shapes,
        grid_spec=grid_spec,
        compiler_params=pltpu.CompilerParams(
            dimension_semantics=("parallel", "arbitrary"),
            vmem_limit_bytes=vmem_limit),
        cost_estimate=pl.CostEstimate(
            flops=flops, transcendentals=transcendentals,
            bytes_accessed=bytes_accessed),
    )(enc_bf, dproj, dec_bf, woc_t, wod_t)

    new_dec = out2d.reshape(B, Lout, H)
    attn_full = attn2d.reshape(B, Lout, lin_pad)
    if lin_pad != Lin:
        attn_full = attn_full[:, :, :Lin]
    return new_dec, attn_full


# ----------------------------------------------------------------------------
# Reference + self-test
# ----------------------------------------------------------------------------
def _reference(encoder_outputs, decoder_outputs, w_general, w_linear_out,
               mxu_dtype=None):
    """Pure-JAX mirror of the PyTorch forward (general, no mask).

    If mxu_dtype is set, matmul operands are cast to it (f32 accumulation),
    mirroring the kernel's bf16 MXU feed."""
    H = encoder_outputs.shape[-1]
    c = (lambda x: x) if mxu_dtype is None else (lambda x: x.astype(mxu_dtype))
    f32 = jnp.float32
    d_proj = jnp.einsum('blh,dh->bld', c(decoder_outputs), c(w_general),
                        preferred_element_type=f32)
    score = jnp.einsum('bld,bkd->blk', c(d_proj), c(encoder_outputs),
                       preferred_element_type=f32)
    attn = jax.nn.sigmoid(score)
    ctx = jnp.einsum('blk,bkh->blh', c(attn), c(encoder_outputs),
                     preferred_element_type=f32)
    w_ctx, w_dec = w_linear_out[:, :H], w_linear_out[:, H:]
    pre = (jnp.einsum('blh,dh->bld', c(ctx), c(w_ctx), preferred_element_type=f32)
           + jnp.einsum('blh,dh->bld', c(decoder_outputs), c(w_dec),
                        preferred_element_type=f32))
    return jnp.tanh(pre), attn


if __name__ == "__main__":
    B, Lin, Lout, H = 2, 16, 8, 32

    key = jax.random.PRNGKey(0)
    k_enc, k_dec, k_wg, k_wo = jax.random.split(key, 4)

    encoder_outputs = jax.random.normal(k_enc, (B, Lin, H), dtype=jnp.float32)
    decoder_outputs = jax.random.normal(k_dec, (B, Lout, H), dtype=jnp.float32)

    # Deterministic parameter init (uniform, roughly nn.Linear default scale).
    bound_g = 1.0 / jnp.sqrt(H)
    bound_o = 1.0 / jnp.sqrt(2 * H)
    w_general = jax.random.uniform(k_wg, (H, H), minval=-bound_g, maxval=bound_g,
                                   dtype=jnp.float32)
    w_linear_out = jax.random.uniform(k_wo, (H, 2 * H), minval=-bound_o,
                                      maxval=bound_o, dtype=jnp.float32)

    new_dec, attn_dis = global_attention_general(
        encoder_outputs, decoder_outputs, w_general, w_linear_out)
    jax.block_until_ready(new_dec)
    jax.block_until_ready(attn_dis)

    assert new_dec.shape == (B, Lout, H)
    assert attn_dis.shape == (B, Lout, Lin)

    # Tight check vs. a reference that mirrors the kernel's bf16 MXU operands.
    ref_dec_bf, ref_attn_bf = _reference(
        encoder_outputs, decoder_outputs, w_general, w_linear_out,
        mxu_dtype=jnp.bfloat16)
    assert jnp.allclose(new_dec, ref_dec_bf, atol=2e-3, rtol=2e-3)
    assert jnp.allclose(attn_dis, ref_attn_bf, atol=2e-3, rtol=2e-3)

    # Loose sanity check vs. the full-f32 PyTorch-equivalent math
    # (bf16 MXU operands are an intentional precision trade-off).
    ref_dec, ref_attn = _reference(
        encoder_outputs, decoder_outputs, w_general, w_linear_out)
    assert jnp.allclose(new_dec, ref_dec, atol=8e-2, rtol=8e-2)
    assert jnp.allclose(attn_dis, ref_attn, atol=8e-2, rtol=8e-2)

    print("KERNEL_OK")
</pallas_src>

<mosaic_0001>
module attributes {stable_mosaic.version = 11 : i64} {
  func.func @_global_attn_kernel(%arg0: i32, %arg1: i32, %arg2: memref<1x128x32xbf16, #tpu.memory_space<vmem>>, %arg3: memref<1x8x32xbf16, #tpu.memory_space<vmem>>, %arg4: memref<1x8x32xbf16, #tpu.memory_space<vmem>>, %arg5: memref<32x32xbf16, #tpu.memory_space<vmem>>, %arg6: memref<32x32xbf16, #tpu.memory_space<vmem>>, %arg7: memref<8x32xf32, #tpu.memory_space<vmem>>, %arg8: memref<8x128xf32, #tpu.memory_space<vmem>>, %arg9: memref<1x8x32xf32, #tpu.memory_space<vmem>>) attributes {dimension_semantics = [#tpu.dimension_semantics<parallel>, #tpu.dimension_semantics<arbitrary>], iteration_bounds = array<i64: 2, 1>, scalar_prefetch = 0 : i64, scratch_operands = 1 : i64, tpu.core_type = #tpu.core_type<tc>, window_params = [{transform_indices = @transform_0, window_bounds = array<i64: 1, 128, 32>}, {transform_indices = @transform_1, window_bounds = array<i64: 1, 8, 32>}, {transform_indices = @transform_2, window_bounds = array<i64: 1, 8, 32>}, {pipeline_mode = #tpu.pipeline_mode<synchronous>, transform_indices = @transform_3, window_bounds = array<i64: 32, 32>}, {pipeline_mode = #tpu.pipeline_mode<synchronous>, transform_indices = @transform_4, window_bounds = array<i64: 32, 32>}, {transform_indices = @transform_5, window_bounds = array<i64: 8, 32>}, {transform_indices = @transform_6, window_bounds = array<i64: 8, 128>}]} {
    %c0_i32 = arith.constant 0 : i32
    %0 = arith.cmpi eq, %arg1, %c0_i32 : i32
    %1 = arith.extui %0 : i1 to i32
    %c0_i32_0 = arith.constant 0 : i32
    %2 = arith.cmpi ne, %1, %c0_i32_0 : i32
    scf.if %2 {
      %cst_18 = arith.constant 0.000000e+00 : f32
      %21 = vector.broadcast %cst_18 : f32 to vector<1x8x32xf32>
      %c0_19 = arith.constant 0 : index
      %c0_20 = arith.constant 0 : index
      %c0_21 = arith.constant 0 : index
      %22 = vector.load %arg9[%c0_19, %c0_20, %c0_21] : memref<1x8x32xf32, #tpu.memory_space<vmem>>, vector<1x8x32xf32>
      tpu.vector_store %arg9[%c0_19, %c0_20, %c0_21], %21 {strides = array<i32>} : memref<1x8x32xf32, #tpu.memory_space<vmem>>, vector<1x8x32xf32>,
    } else {
    }
    %c0 = arith.constant 0 : index
    %c0_1 = arith.constant 0 : index
    %c0_2 = arith.constant 0 : index
    %3 = vector.load %arg2[%c0, %c0_1, %c0_2] : memref<1x128x32xbf16, #tpu.memory_space<vmem>>, vector<1x128x32xbf16>
    %c0_3 = arith.constant 0 : index
    %c0_4 = arith.constant 0 : index
    %c0_5 = arith.constant 0 : index
    %4 = vector.load %arg3[%c0_3, %c0_4, %c0_5] : memref<1x8x32xbf16, #tpu.memory_space<vmem>>, vector<1x8x32xbf16>
    "tpu.trace_start"() <{level = 10 : i32, message = "bld,bkd->blk"}> : () -> ()
    %cst = arith.constant dense<0.000000e+00> : vector<1x8x128xf32>
    %5 = tpu.matmul %4, %3, %cst {dimension_numbers = #tpu.dot_dimension_numbers<[2], [2], [1], [1], [0, 0, 0, 1, 1, 1], [0], [0]>} : vector<1x8x32xbf16>, vector<1x128x32xbf16>, vector<1x8x128xf32> -> vector<1x8x128xf32>
    "tpu.trace_stop"() : () -> ()
    %6 = arith.negf %5 : vector<1x8x128xf32>
    %7 = math.exp %6 : vector<1x8x128xf32>
    %cst_6 = arith.constant 1.000000e+00 : f32
    %8 = vector.broadcast %cst_6 : f32 to vector<1x8x128xf32>
    %9 = arith.addf %8, %7 : vector<1x8x128xf32>
    %10 = arith.divf %8, %9 : vector<1x8x128xf32>
    %11 = vector.shape_cast %10 : vector<1x8x128xf32> to vector<8x128xf32>
    %c0_7 = arith.constant 0 : index
    %c0_8 = arith.constant 0 : index
    %12 = vector.load %arg8[%c0_7, %c0_8] : memref<8x128xf32, #tpu.memory_space<vmem>>, vector<8x128xf32>
    tpu.vector_store %arg8[%c0_7, %c0_8], %11 {strides = array<i32>} : memref<8x128xf32, #tpu.memory_space<vmem>>, vector<8x128xf32>,
    %c0_9 = arith.constant 0 : index
    %c0_10 = arith.constant 0 : index
    %c0_11 = arith.constant 0 : index
    %13 = vector.load %arg9[%c0_9, %c0_10, %c0_11] : memref<1x8x32xf32, #tpu.memory_space<vmem>>, vector<1x8x32xf32>
    %14 = arith.truncf %10 : vector<1x8x128xf32> to vector<1x8x128xbf16>
    "tpu.trace_start"() <{level = 10 : i32, message = "blk,bkh->blh"}> : () -> ()
    %cst_12 = arith.constant dense<0.000000e+00> : vector<1x8x32xf32>
    %15 = tpu.matmul %14, %3, %cst_12 {dimension_numbers = #tpu.dot_dimension_numbers<[2], [1], [1], [2], [0, 0, 0, 1, 1, 2], [0], [0]>} : vector<1x8x128xbf16>, vector<1x128x32xbf16>, vector<1x8x32xf32> -> vector<1x8x32xf32>
    "tpu.trace_stop"() : () -> ()
    %16 = arith.addf %13, %15 : vector<1x8x32xf32>
    %c0_13 = arith.constant 0 : index
    %c0_14 = arith.constant 0 : index
    %c0_15 = arith.constant 0 : index
    %17 = vector.load %arg9[%c0_13, %c0_14, %c0_15] : memref<1x8x32xf32, #tpu.memory_space<vmem>>, vector<1x8x32xf32>
    tpu.vector_store %arg9[%c0_13, %c0_14, %c0_15], %16 {strides = array<i32>} : memref<1x8x32xf32, #tpu.memory_space<vmem>>, vector<1x8x32xf32>,
    %c0_i32_16 = arith.constant 0 : i32
    %18 = arith.cmpi eq, %arg1, %c0_i32_16 : i32
    %19 = arith.extui %18 : i1 to i32
    %c0_i32_17 = arith.constant 0 : i32
    %20 = arith.cmpi ne, %19, %c0_i32_17 : i32
    scf.if %20 {
      %c0_18 = arith.constant 0 : index
      %c0_19 = arith.constant 0 : index
      %c0_20 = arith.constant 0 : index
      %21 = vector.load %arg9[%c0_18, %c0_19, %c0_20] : memref<1x8x32xf32, #tpu.memory_space<vmem>>, vector<1x8x32xf32>
      %22 = arith.truncf %21 : vector<1x8x32xf32> to vector<1x8x32xbf16>
      %23 = vector.shape_cast %22 : vector<1x8x32xbf16> to vector<8x32xbf16>
      %c0_21 = arith.constant 0 : index
      %c0_22 = arith.constant 0 : index
      %c0_23 = arith.constant 0 : index
      %24 = vector.load %arg4[%c0_21, %c0_22, %c0_23] : memref<1x8x32xbf16, #tpu.memory_space<vmem>>, vector<1x8x32xbf16>
      %25 = vector.shape_cast %24 : vector<1x8x32xbf16> to vector<8x32xbf16>
      %c0_24 = arith.constant 0 : index
      %c0_25 = arith.constant 0 : index
      %26 = vector.load %arg5[%c0_24, %c0_25] : memref<32x32xbf16, #tpu.memory_space<vmem>>, vector<32x32xbf16>
      %cst_26 = arith.constant dense<0.000000e+00> : vector<8x32xf32>
      %27 = tpu.matmul %23, %26, %cst_26 {dimension_numbers = #tpu.dot_dimension_numbers<[1], [0], [0], [1], [0, 0, 1, 1], [], []>} : vector<8x32xbf16>, vector<32x32xbf16>, vector<8x32xf32> -> vector<8x32xf32>
      %c0_27 = arith.constant 0 : index
      %c0_28 = arith.constant 0 : index
      %28 = vector.load %arg6[%c0_27, %c0_28] : memref<32x32xbf16, #tpu.memory_space<vmem>>, vector<32x32xbf16>
      %cst_29 = arith.constant dense<0.000000e+00> : vector<8x32xf32>
      %29 = tpu.matmul %25, %28, %cst_29 {dimension_numbers = #tpu.dot_dimension_numbers<[1], [0], [0], [1], [0, 0, 1, 1], [], []>} : vector<8x32xbf16>, vector<32x32xbf16>, vector<8x32xf32> -> vector<8x32xf32>
      %30 = arith.addf %27, %29 : vector<8x32xf32>
      %31 = math.tanh %30 : vector<8x32xf32>
      %c0_30 = arith.constant 0 : index
      %c0_31 = arith.constant 0 : index
      %32 = vector.load %arg7[%c0_30, %c0_31] : memref<8x32xf32, #tpu.memory_space<vmem>>, vector<8x32xf32>
      tpu.vector_store %arg7[%c0_30, %c0_31], %31 {strides = array<i32>} : memref<8x32xf32, #tpu.memory_space<vmem>>, vector<8x32xf32>,
    } else {
    }
    return
  }
  func.func @transform_0(%arg0: i32, %arg1: i32) -> (i32, i32, i32) {
    %c0_i32 = arith.constant 0 : i32
    %c0_i32_0 = arith.constant 0 : i32
    return %arg0, %arg1, %c0_i32 : i32, i32, i32
  }
  func.func @transform_1(%arg0: i32, %arg1: i32) -> (i32, i32, i32) {
    %c0_i32 = arith.constant 0 : i32
    %c0_i32_0 = arith.constant 0 : i32
    %c0_i32_1 = arith.constant 0 : i32
    return %arg0, %c0_i32, %c0_i32_0 : i32, i32, i32
  }
  func.func @transform_2(%arg0: i32, %arg1: i32) -> (i32, i32, i32) {
    %c0_i32 = arith.constant 0 : i32
    %c0_i32_0 = arith.constant 0 : i32
    %c0_i32_1 = arith.constant 0 : i32
    return %arg0, %c0_i32, %c0_i32_0 : i32, i32, i32
  }
  func.func @transform_3(%arg0: i32, %arg1: i32) -> (i32, i32) {
    %c0_i32 = arith.constant 0 : i32
    %c0_i32_0 = arith.constant 0 : i32
    %c0_i32_1 = arith.constant 0 : i32
    return %c0_i32, %c0_i32_0 : i32, i32
  }
  func.func @transform_4(%arg0: i32, %arg1: i32) -> (i32, i32) {
    %c0_i32 = arith.constant 0 : i32
    %c0_i32_0 = arith.constant 0 : i32
    %c0_i32_1 = arith.constant 0 : i32
    return %c0_i32, %c0_i32_0 : i32, i32
  }
  func.func @transform_5(%arg0: i32, %arg1: i32) -> (i32, i32) {
    %c0_i32 = arith.constant 0 : i32
    %c0_i32_0 = arith.constant 0 : i32
    return %arg0, %c0_i32 : i32, i32
  }
  func.func @transform_6(%arg0: i32, %arg1: i32) -> (i32, i32) {
    %c0_i32 = arith.constant 0 : i32
    return %arg0, %arg1 : i32, i32
  }
}

</mosaic_0001>

<llo_original>
// kernel: tpu_custom_call.1
$region0: #{tpu_custom_call.1}
  #allocation0 [shape = 'u32[]', space=smem, size = 0x4, offset = 0x4, fixed_abs, tag = 'smem constant byte address 0x4 - core index']
  #allocation1 [shape = 'u32[144,128]{1,0:T(1,128)}', space=vmem, size = 0x12000, scoped, tag = 'internal scratch']
  #allocation2 [shape = 'f32[1,8,32]{2,1,0:T(8,128)}', space=vmem, size = 0x1000, scoped, tag = 'scratch operand']
  %s0 = inlined_call_operand.vmem [shape: bf16[2,128,32], index: 0, kind: input, shape index: {}]
  %s1 = inlined_call_operand.vmem [shape: bf16[2,8,32], index: 1, kind: input, shape index: {}]
  %s2 = inlined_call_operand.vmem [shape: bf16[2,8,32], index: 2, kind: input, shape index: {}]
  %s3 = inlined_call_operand.vmem [shape: bf16[32,32], index: 3, kind: input, shape index: {}]
  %s4 = inlined_call_operand.vmem [shape: bf16[32,32], index: 4, kind: input, shape index: {}]
  %s5 = inlined_call_operand.hbm [shape: f32[16,32], index: 5, kind: output, shape index: {0}]
  %s6 = inlined_call_operand.hbm [shape: f32[16,128], index: 6, kind: output, shape index: {1}]
  %7 = xla_tuple %s5, %s6
  %s8 = sld [smem:[#allocation0]]
  $region69: #{tpu_custom_call.1} parent=0
    _
  %s10 = ssub.s32 1, %s8
  %s11 = scalar_select 0, %s10, %s8
  $region1: #{tpu_custom_call.1} parent=0
    #allocation3 [shape = 'u8[8192]{0}', space=vmem, size = 0x2000, scoped, tag = 'output window, operand 0']
    #allocation4 [shape = 's32[2]{0}', space=sflag, size = 0x8, scoped, tag = 'scoped memory for tpu_custom_call.1']
    #allocation5 [shape = 'u8[8192]{0}', space=vmem, size = 0x2000, scoped, tag = 'output window, operand 1']
    #allocation6 [shape = 's32[2]{0}', space=sflag, size = 0x8, scoped, tag = 'scoped memory for tpu_custom_call.1']
    %12 = vsyncpa [#allocation4], 0
    %s13 = scalar_lea.sflag [#allocation4], 1
    %14 = vsyncpa %s13, 0
    %15 = vsyncpa [#allocation6], 0
    %s16 = scalar_lea.sflag [#allocation6], 1
    %17 = vsyncpa %s16, 0
    loop: start=0, step=1, limit=4
    $region2: #{tpu_custom_call.1} parent=1 // loop_pre_header
      _
    $region3: #{tpu_custom_call.1} parent=1 // loop_header
      %s19 = sphi 0, %s23
      %p20 = scmp.ge.s32.totalorder %s19, 4
      %s26 = sphi 0, %s38
      %s27 = sphi 0, %s34
      %s28 = sphi 0, %s26
      %s29 = sphi 0, %s27
      %s30 = sphi 0, %s28
      %s31 = sphi 0, %s29
      %s43 = sphi 0, %s45
      %s46 = sphi 0, %s43
      %s47 = sphi 0, %s46
      %s63 = sphi 0, %s47
      %s69 = sphi 0, %s71
      %s72 = sphi 0, %s69
      %s73 = sphi 0, %s72
      %s89 = sphi 0, %s73
      %s95 = sphi 0, %s97
      %s98 = sphi 0, %s95
      %s99 = sphi 0, %s98
      %s115 = sphi 0, %s99
      %s119 = sphi 0, %s119
      %s121 = sphi 0, %s119
      %s122 = sphi 0, %s121
      %s136 = sphi 0, %s122
      %s140 = sphi 0, %s140
      %s142 = sphi 0, %s140
      %s143 = sphi 0, %s142
      %s157 = sphi 0, %s143
      %s163 = sphi 0, %s165
      %s166 = sphi 0, %s163
      %s167 = sphi 0, %s166
      %s183 = sphi 0, %s167
      %s191 = sphi 0, %s193
      %s194 = sphi 0, %s191
      %s195 = sphi 0, %s194
      %s211 = sphi 0, %s195
    $region4: #{tpu_custom_call.1} parent=1 // loop_header_branch
      %22 = sbr.rel (%p20) target = $region8
    $region5: #{tpu_custom_call.1} parent=1 // loop_body
      %s24 = ssub.s32 %s19, 1
      %s25 = ssub.s32 %s19, 2
      %s32 = sadd.s32 1, %s27
      %p33 = scmp.ge.s32.totalorder %s32, 1
      %s34 = scalar_select %p33, 0, %s32
      %s35 = sadd.s32 1, %s26
      %s36 = scalar_select %p33, %s35, %s26
      %p37 = scmp.ge.s32.totalorder %s36, 2
      %s38 = scalar_select %p37, 0, %s36
      %s39 = ssub.s32 %s26, %s38
      %s40 = ssub.s32 %s27, %s34
      %s41 = sor.u32 %s39, %s40
      %p42 = scmp.eq.s32.totalorder %s41, 0
      %s44 = sadd.s32 %s43, 1
      %s45 = scalar_select %p42, %s43, %s44
      %p48 = pneg %p42
      %p49 = scmp.eq.s32.totalorder %s19, 1
      %p50 = por %p48, %p49
      %p51 = scmp.ne.s32.totalorder %s43, %s46
      %p52 = scmp.eq.s32.totalorder %s19, 0
      %p53 = por %p51, %p52
      %p54 = scmp.ne.s32.totalorder %s43, %s46
      %p55 = scmp.eq.s32.totalorder %s24, 1
      %p56 = por %p54, %p55
      %p57 = scmp.ne.s32.totalorder %s46, %s47
      %p58 = scmp.eq.s32.totalorder %s24, 0
      %p59 = por %p57, %p58
      %p60 = scmp.ne.s32.totalorder %s46, %s47
      %p61 = scmp.eq.s32.totalorder %s25, 1
      %p62 = por %p60, %p61
      %p64 = scmp.ne.s32.totalorder %s47, %s63
      %p65 = scmp.eq.s32.totalorder %s25, 0
      %p66 = por %p64, %p65
      %s67 = ssub.s32 %s26, %s38
      %p68 = scmp.eq.s32.totalorder %s67, 0
      %s70 = sadd.s32 %s69, 1
      %s71 = scalar_select %p68, %s69, %s70
      %p74 = pneg %p68
      %p75 = scmp.eq.s32.totalorder %s19, 1
      %p76 = por %p74, %p75
      %p77 = scmp.ne.s32.totalorder %s69, %s72
      %p78 = scmp.eq.s32.totalorder %s19, 0
      %p79 = por %p77, %p78
      %p80 = scmp.ne.s32.totalorder %s69, %s72
      %p81 = scmp.eq.s32.totalorder %s24, 1
      %p82 = por %p80, %p81
      %p83 = scmp.ne.s32.totalorder %s72, %s73
      %p84 = scmp.eq.s32.totalorder %s24, 0
      %p85 = por %p83, %p84
      %p86 = scmp.ne.s32.totalorder %s72, %s73
      %p87 = scmp.eq.s32.totalorder %s25, 1
      %p88 = por %p86, %p87
      %p90 = scmp.ne.s32.totalorder %s73, %s89
      %p91 = scmp.eq.s32.totalorder %s25, 0
      %p92 = por %p90, %p91
      %s93 = ssub.s32 %s26, %s38
      %p94 = scmp.eq.s32.totalorder %s93, 0
      %s96 = sadd.s32 %s95, 1
      %s97 = scalar_select %p94, %s95, %s96
      %p100 = pneg %p94
      %p101 = scmp.eq.s32.totalorder %s19, 1
      %p102 = por %p100, %p101
      %p103 = scmp.ne.s32.totalorder %s95, %s98
      %p104 = scmp.eq.s32.totalorder %s19, 0
      %p105 = por %p103, %p104
      %p106 = scmp.ne.s32.totalorder %s95, %s98
      %p107 = scmp.eq.s32.totalorder %s24, 1
      %p108 = por %p106, %p107
      %p109 = scmp.ne.s32.totalorder %s98, %s99
      %p110 = scmp.eq.s32.totalorder %s24, 0
      %p111 = por %p109, %p110
      %p112 = scmp.ne.s32.totalorder %s98, %s99
      %p113 = scmp.eq.s32.totalorder %s25, 1
      %p114 = por %p112, %p113
      %p116 = scmp.ne.s32.totalorder %s99, %s115
      %p117 = scmp.eq.s32.totalorder %s25, 0
      %p118 = por %p116, %p117
      %s120 = sadd.s32 %s119, 1
      %p123 = scmp.eq.s32.totalorder %s19, 1
      %p124 = scmp.ne.s32.totalorder %s119, %s121
      %p125 = scmp.eq.s32.totalorder %s19, 0
      %p126 = por %p124, %p125
      %p127 = scmp.ne.s32.totalorder %s119, %s121
      %p128 = scmp.eq.s32.totalorder %s24, 1
      %p129 = por %p127, %p128
      %p130 = scmp.ne.s32.totalorder %s121, %s122
      %p131 = scmp.eq.s32.totalorder %s24, 0
      %p132 = por %p130, %p131
      %p133 = scmp.ne.s32.totalorder %s121, %s122
      %p134 = scmp.eq.s32.totalorder %s25, 1
      %p135 = por %p133, %p134
      %p137 = scmp.ne.s32.totalorder %s122, %s136
      %p138 = scmp.eq.s32.totalorder %s25, 0
      %p139 = por %p137, %p138
      %s141 = sadd.s32 %s140, 1
      %p144 = scmp.eq.s32.totalorder %s19, 1
      %p145 = scmp.ne.s32.totalorder %s140, %s142
      %p146 = scmp.eq.s32.totalorder %s19, 0
      %p147 = por %p145, %p146
      %p148 = scmp.ne.s32.totalorder %s140, %s142
      %p149 = scmp.eq.s32.totalorder %s24, 1
      %p150 = por %p148, %p149
      %p151 = scmp.ne.s32.totalorder %s142, %s143
      %p152 = scmp.eq.s32.totalorder %s24, 0
      %p153 = por %p151, %p152
      %p154 = scmp.ne.s32.totalorder %s142, %s143
      %p155 = scmp.eq.s32.totalorder %s25, 1
      %p156 = por %p154, %p155
      %p158 = scmp.ne.s32.totalorder %s143, %s157
      %p159 = scmp.eq.s32.totalorder %s25, 0
      %p160 = por %p158, %p159
      %s161 = ssub.s32 %s26, %s38
      %p162 = scmp.eq.s32.totalorder %s161, 0
      %s164 = sadd.s32 %s163, 1
      %s165 = scalar_select %p162, %s163, %s164
      %p168 = pneg %p162
      %p169 = scmp.eq.s32.totalorder %s19, 1
      %p170 = por %p168, %p169
      %p171 = scmp.ne.s32.totalorder %s163, %s166
      %p172 = scmp.eq.s32.totalorder %s19, 0
      %p173 = por %p171, %p172
      %p174 = scmp.ne.s32.totalorder %s163, %s166
      %p175 = scmp.eq.s32.totalorder %s24, 1
      %p176 = por %p174, %p175
      %p177 = scmp.ne.s32.totalorder %s166, %s167
      %p178 = scmp.eq.s32.totalorder %s24, 0
      %p179 = por %p177, %p178
      %p180 = scmp.ne.s32.totalorder %s166, %s167
      %p181 = scmp.eq.s32.totalorder %s25, 1
      %p182 = por %p180, %p181
      %p184 = scmp.ne.s32.totalorder %s167, %s183
      %p185 = scmp.eq.s32.totalorder %s25, 0
      %p186 = por %p184, %p185
      %s187 = ssub.s32 %s26, %s38
      %s188 = ssub.s32 %s27, %s34
      %s189 = sor.u32 %s187, %s188
      %p190 = scmp.eq.s32.totalorder %s189, 0
      %s192 = sadd.s32 %s191, 1
      %s193 = scalar_select %p190, %s191, %s192
      %p196 = pneg %p190
      %p197 = scmp.eq.s32.totalorder %s19, 1
      %p198 = por %p196, %p197
      %p199 = scmp.ne.s32.totalorder %s191, %s194
      %p200 = scmp.eq.s32.totalorder %s19, 0
      %p201 = por %p199, %p200
      %p202 = scmp.ne.s32.totalorder %s191, %s194
      %p203 = scmp.eq.s32.totalorder %s24, 1
      %p204 = por %p202, %p203
      %p205 = scmp.ne.s32.totalorder %s194, %s195
      %p206 = scmp.eq.s32.totalorder %s24, 0
      %p207 = por %p205, %p206
      %p208 = scmp.ne.s32.totalorder %s194, %s195
      %p209 = scmp.eq.s32.totalorder %s25, 1
      %p210 = por %p208, %p209
      %p212 = scmp.ne.s32.totalorder %s195, %s211
      %p213 = scmp.eq.s32.totalorder %s25, 0
      %p214 = por %p212, %p213
      %p215 = scmp.le.s32.totalorder 1, %s19
      %p216 = scmp.lt.s32.totalorder %s19, 3
      %p217 = pnand %p215, %p216
      %p218 = pneg %p217
      // Predicated region
      $region9: #{tpu_custom_call.1} parent=5 // pred_check
        _
      $region10: #{tpu_custom_call.1} parent=5 // pred_check_branch
        %220 = sbr.rel (%p217) target = $region12
      $region11: #{tpu_custom_call.1} parent=5 // pred_region
        %s221 = ssub.s32 %s19, 1
        // Predicated region
        $region13: #{tpu_custom_call.1} parent=11 // pred_check
          %p222 = pneg %p132
        $region14: #{tpu_custom_call.1} parent=11 // pred_check_branch
          %224 = sbr.rel (%p222) target = $region16
        $region15: #{tpu_custom_call.1} parent=11 // pred_region
          _
        $region16: #{tpu_custom_call.1} parent=11 // pred_fallthru
          _
        // Predicated region
        $region17: #{tpu_custom_call.1} parent=11 // pred_check
          %p225 = pneg %p153
        $region18: #{tpu_custom_call.1} parent=11 // pred_check_branch
          %227 = sbr.rel (%p225) target = $region20
        $region19: #{tpu_custom_call.1} parent=11 // pred_region
          _
        $region20: #{tpu_custom_call.1} parent=11 // pred_fallthru
          _
      $region12: #{tpu_custom_call.1} parent=5 // pred_fallthru
        _
      %p228 = scmp.lt.s32.totalorder %s19, 2
      // Predicated region
      $region21: #{tpu_custom_call.1} parent=5 // pred_check
        %p229 = pneg %p228
      $region22: #{tpu_custom_call.1} parent=5 // pred_check_branch
        %231 = sbr.rel (%p229) target = $region24
      $region23: #{tpu_custom_call.1} parent=5 // pred_region
        // Predicated region
        $region25: #{tpu_custom_call.1} parent=23 // pred_check
          %p232 = pneg %p53
        $region26: #{tpu_custom_call.1} parent=23 // pred_check_branch
          %234 = sbr.rel (%p232) target = $region28
        $region27: #{tpu_custom_call.1} parent=23 // pred_region
          %s235 = smul.u32 16, %s27
          %p236 = scmp.lt.s32.totalorder %s26, 1
          %s237 = scalar_select %p236, %s26, 1
          %p238 = scmp.lt.s32.totalorder %s235, 15
          %s239 = scalar_select %p238, %s235, 15
          %s240 = smul.addr %s237, 16
          %s241 = sadd.s32 %s239, %s240
          %s242 = smul.addr %s241, 4
          %s243 = scalar_lea.vmem %s0, %s242
          %s244 = smul.u32 16, %s27
        $region28: #{tpu_custom_call.1} parent=23 // pred_fallthru
          _
        // Predicated region
        $region29: #{tpu_custom_call.1} parent=23 // pred_check
          %p245 = pneg %p79
        $region30: #{tpu_custom_call.1} parent=23 // pred_check_branch
          %247 = sbr.rel (%p245) target = $region32
        $region31: #{tpu_custom_call.1} parent=23 // pred_region
          %p248 = scmp.lt.s32.totalorder %s26, 1
          %s249 = scalar_select %p248, %s26, 1
          %s250 = smul.addr %s249, 4
          %s251 = scalar_lea.vmem %s1, %s250
        $region32: #{tpu_custom_call.1} parent=23 // pred_fallthru
          _
        // Predicated region
        $region33: #{tpu_custom_call.1} parent=23 // pred_check
          %p252 = pneg %p105
        $region34: #{tpu_custom_call.1} parent=23 // pred_check_branch
          %254 = sbr.rel (%p252) target = $region36
        $region35: #{tpu_custom_call.1} parent=23 // pred_region
          %p255 = scmp.lt.s32.totalorder %s26, 1
          %s256 = scalar_select %p255, %s26, 1
          %s257 = smul.addr %s256, 4
          %s258 = scalar_lea.vmem %s2, %s257
        $region36: #{tpu_custom_call.1} parent=23 // pred_fallthru
          _
      $region24: #{tpu_custom_call.1} parent=5 // pred_fallthru
        _
      %p259 = scmp.le.s32.totalorder 1, %s19
      %p260 = scmp.lt.s32.totalorder %s19, 3
      %p261 = pnand %p259, %p260
      %p262 = pneg %p261
      // Predicated region
      $region37: #{tpu_custom_call.1} parent=5 // pred_check
        _
      $region38: #{tpu_custom_call.1} parent=5 // pred_check_branch
        %264 = sbr.rel (%p261) target = $region40
      $region39: #{tpu_custom_call.1} parent=5 // pred_region
        %s265 = ssub.s32 %s19, 1
        %s266 = smul.u32 16, %s29
        %p267 = scmp.lt.s32.totalorder %s28, 1
        %s268 = scalar_select %p267, %s28, 1
        %p269 = scmp.lt.s32.totalorder %s266, 15
        %s270 = scalar_select %p269, %s266, 15
        %s271 = smul.addr %s268, 16
        %s272 = sadd.s32 %s270, %s271
        %s273 = smul.addr %s272, 4
        %s274 = scalar_lea.vmem %s0, %s273
        %p275 = pneg %p59
        %p276 = pneg %p56
        %p277 = scmp.lt.s32.totalorder %s28, 1
        %s278 = scalar_select %p277, %s28, 1
        %s279 = smul.addr %s278, 4
        %s280 = scalar_lea.vmem %s1, %s279
        %p281 = pneg %p85
        %p282 = pneg %p82
        %p283 = scmp.lt.s32.totalorder %s28, 1
        %s284 = scalar_select %p283, %s28, 1
        %s285 = smul.addr %s284, 4
        %s286 = scalar_lea.vmem %s2, %s285
        %p287 = pneg %p111
        %p288 = pneg %p108
        %p289 = pneg %p132
        %p290 = pneg %p129
        %p291 = pneg %p153
        %p292 = pneg %p150
        %p293 = pneg %p179
        %p294 = pneg %p176
        %s295 = sand.u32 %s166, 1
        %s296 = scalar_lea.sflag [#allocation4], %s295
        %s297 = sand.u32 %s166, 1
        %s298 = smul.addr %s297, 8
        %s299 = scalar_lea.vmem [#allocation3], %s298
        %p300 = pneg %p207
        %p301 = pneg %p204
        %s302 = sand.u32 %s194, 1
        %s303 = scalar_lea.sflag [#allocation6], %s302
        %s304 = sand.u32 %s194, 1
        %s305 = smul.addr %s304, 8
        %s306 = scalar_lea.vmem [#allocation5], %s305
        %s307 = smul.u32 16, %s29
        %p308 = scmp.lt.s32.totalorder %s28, 1
        %s309 = scalar_select %p308, %s28, 1
        %p310 = scmp.lt.s32.totalorder %s307, 15
        %s311 = scalar_select %p310, %s307, 15
        %s312 = smul.addr %s309, 16
        %s313 = sadd.s32 %s311, %s312
        %s314 = smul.addr %s313, 4
        %s315 = scalar_lea.vmem %s0, %s314
        %s316 = smul.u32 16, %s29
        %p317 = scmp.lt.s32.totalorder %s28, 1
        %s318 = scalar_select %p317, %s28, 1
        %s319 = smul.addr %s318, 4
        %s320 = scalar_lea.vmem %s1, %s319
        %p321 = scmp.lt.s32.totalorder %s28, 1
        %s322 = scalar_select %p321, %s28, 1
        %s323 = smul.addr %s322, 4
        %s324 = scalar_lea.vmem %s2, %s323
        %p326 = scmp.eq.s32.totalorder %s29, 0
        // Predicated region
        $region41: #{tpu_custom_call.1} parent=39 // pred_check
          %p327 = pneg %p326
        $region42: #{tpu_custom_call.1} parent=39 // pred_check_branch
          %329 = sbr.rel (%p327) target = $region44
        $region43: #{tpu_custom_call.1} parent=39 // pred_region
          %vm330 = vcmask 261120
          %331 = vst.msk [vmem:[#allocation2] sm:$0xff] %vm330, 0.0
        $region44: #{tpu_custom_call.1} parent=39 // pred_fallthru
          _
        %v332 = vld [vmem:[%s315] sm:$0xf]
        %v333 = vld [vmem:[%s315 + $0x4] sm:$0xf]
        %v334 = vld [vmem:[%s315 + $0x8] sm:$0xf]
        %v335 = vld [vmem:[%s315 + $0xc] sm:$0xf]
        %v336 = vld [vmem:[%s315 + $0x10] sm:$0xf]
        %v337 = vld [vmem:[%s315 + $0x14] sm:$0xf]
        %v338 = vld [vmem:[%s315 + $0x18] sm:$0xf]
        %v339 = vld [vmem:[%s315 + $0x1c] sm:$0xf]
        %v340 = vld [vmem:[%s315 + $0x20] sm:$0xf]
        %v341 = vld [vmem:[%s315 + $0x24] sm:$0xf]
        %v342 = vld [vmem:[%s315 + $0x28] sm:$0xf]
        %v343 = vld [vmem:[%s315 + $0x2c] sm:$0xf]
        %v344 = vld [vmem:[%s315 + $0x30] sm:$0xf]
        %v345 = vld [vmem:[%s315 + $0x34] sm:$0xf]
        %v346 = vld [vmem:[%s315 + $0x38] sm:$0xf]
        %v347 = vld [vmem:[%s315 + $0x3c] sm:$0xf]
        %v348 = vld [vmem:[%s320] sm:$0xf]
        %v365 = vunpack.c.l.b16 %v332
        %v366 = vunpack.c.l.b16 %v333
        %v367 = vunpack.c.l.b16 %v334
        %v368 = vunpack.c.l.b16 %v335
        %v369 = vunpack.c.l.b16 %v336
        %v370 = vunpack.c.l.b16 %v337
        %v371 = vunpack.c.l.b16 %v338
        %v372 = vunpack.c.l.b16 %v339
        %v373 = vunpack.c.l.b16 %v340
        %v374 = vunpack.c.l.b16 %v341
        %v375 = vunpack.c.l.b16 %v342
        %v376 = vunpack.c.l.b16 %v343
        %v377 = vunpack.c.l.b16 %v344
        %v378 = vunpack.c.l.b16 %v345
        %v379 = vunpack.c.l.b16 %v346
        %v380 = vunpack.c.l.b16 %v347
        %v381 = vpack.c.b16 %v366, %v365
        %v382 = vpack.c.b16 %v368, %v367
        %v383 = vpack.c.b16 %v370, %v369
        %v384 = vpack.c.b16 %v372, %v371
        %v385 = vpack.c.b16 %v374, %v373
        %v386 = vpack.c.b16 %v376, %v375
        %v387 = vpack.c.b16 %v378, %v377
        %v388 = vpack.c.b16 %v380, %v379
        %vm389 = vcmask 261120
        %v391 = vsel %vm389, %v348, 0
        %v394 = vsel %vm389, %v381, 0
        %v397 = vsel %vm389, %v382, 0
        %v400 = vsel %vm389, %v383, 0
        %v403 = vsel %vm389, %v384, 0
        %v406 = vsel %vm389, %v385, 0
        %v409 = vsel %vm389, %v386, 0
        %v412 = vsel %vm389, %v387, 0
        %v415 = vsel %vm389, %v388, 0
        %417 = vmatprep.subr.bf16.mxu0 0
        %418 = vmatpush1.bf16.xpose.msra.mxu0 %v394
        %419 = vmatprep.subr.bf16.mxu0 0
        %420 = vmatpush1.bf16.xpose.msra.mxu0 %v397
        %421 = vmatprep.subr.bf16.mxu0 0
        %422 = vmatpush1.bf16.xpose.msra.mxu0 %v400
        %423 = vmatprep.subr.bf16.mxu0 0
        %424 = vmatpush1.bf16.xpose.msra.mxu0 %v403
        %425 = vmatprep.subr.bf16.mxu0 0
        %426 = vmatpush1.bf16.xpose.msra.mxu0 %v406
        %427 = vmatprep.subr.bf16.mxu0 0
        %428 = vmatpush1.bf16.xpose.msra.mxu0 %v409
        %429 = vmatprep.subr.bf16.mxu0 0
        %430 = vmatpush1.bf16.xpose.msra.mxu0 %v412
        %431 = vmatprep.subr.bf16.mxu0 0
        %432 = vmatpush1.bf16.xpose.msra.mxu0 %v415
        %433 = vmatprep.subr.bf16.mxu0 0
        %434 = vmatpush1.bf16.xpose.msra.mxu0 0
        %435 = vmatprep.subr.bf16.mxu0 0
        %436 = vmatpush1.bf16.xpose.msra.mxu0 0
        %437 = vmatprep.subr.bf16.mxu0 0
        %438 = vmatpush1.bf16.xpose.msra.mxu0 0
        %439 = vmatprep.subr.bf16.mxu0 0
        %440 = vmatpush1.bf16.xpose.msra.mxu0 0
        %441 = vmatprep.subr.bf16.mxu0 0
        %442 = vmatpush1.bf16.xpose.msra.mxu0 0
        %443 = vmatprep.subr.bf16.mxu0 0
        %444 = vmatpush1.bf16.xpose.msra.mxu0 0
        %445 = vmatprep.subr.bf16.mxu0 0
        %446 = vmatpush1.bf16.xpose.msra.mxu0 0
        %447 = vmatprep.subr.bf16.mxu0 0
        %448 = vmatpush1.bf16.xpose.msra.mxu0 0
        %449 = vmatprep.mubr.bf16.mxu0 0
        %450 = vmatmul.mubr.bf16.gmra.mrb[0].mxu0 %v391
        %v451 = vpop.f32.mrb[0].mxu0
        %v452 = vadd.f32 0.0, %v451
        %v453 = vpop.f32.mrb[0].mxu0
        %v454 = vpop.f32.mrb[0].mxu0
        %v455 = vpop.f32.mrb[0].mxu0
        %456 = vdwg.mxu0
        %v457 = vxor.u32 %v452, 2147483648
        %v458 = vmul.f32 %v457, 1.442695
        %v459 = vpow.pop %v458
        %v460 = vadd.f32 %v459, 1.0
        %v461 = vrcp.pop %v460
        %v462 = vmul.f32 1.0, %v461
        %463 = vst [vmem:[%s306] sm:$0xff] %v462
        %v464 = vld [vmem:[#allocation2] sm:$0xff]
        %v465 = vpack.c.bf16 %v462, %v462
        %474 = vmatprep.subr.bf16.mxu0 0
        %475 = vmatpush1.bf16.msra.mxu0 %v381
        %476 = vmatprep.subr.bf16.mxu0 0
        %477 = vmatpush1.bf16.msra.mxu0 %v382
        %478 = vmatprep.subr.bf16.mxu0 0
        %479 = vmatpush1.bf16.msra.mxu0 %v383
        %480 = vmatprep.subr.bf16.mxu0 0
        %481 = vmatpush1.bf16.msra.mxu0 %v384
        %482 = vmatprep.subr.bf16.mxu0 0
        %483 = vmatpush1.bf16.msra.mxu0 %v385
        %484 = vmatprep.subr.bf16.mxu0 0
        %485 = vmatpush1.bf16.msra.mxu0 %v386
        %486 = vmatprep.subr.bf16.mxu0 0
        %487 = vmatpush1.bf16.msra.mxu0 %v387
        %488 = vmatprep.subr.bf16.mxu0 0
        %489 = vmatpush1.bf16.msra.mxu0 %v388
        %490 = vmatprep.subr.bf16.mxu0 0
        %491 = vmatpush1.bf16.msra.mxu0 0
        %492 = vmatprep.subr.bf16.mxu0 0
        %493 = vmatpush1.bf16.msra.mxu0 0
        %494 = vmatprep.subr.bf16.mxu0 0
        %495 = vmatpush1.bf16.msra.mxu0 0
        %496 = vmatprep.subr.bf16.mxu0 0
        %497 = vmatpush1.bf16.msra.mxu0 0
        %498 = vmatprep.subr.bf16.mxu0 0
        %499 = vmatpush1.bf16.msra.mxu0 0
        %500 = vmatprep.subr.bf16.mxu0 0
        %501 = vmatpush1.bf16.msra.mxu0 0
        %502 = vmatprep.subr.bf16.mxu0 0
        %503 = vmatpush1.bf16.msra.mxu0 0
        %504 = vmatprep.subr.bf16.mxu0 0
        %505 = vmatpush1.bf16.msra.mxu0 0
        %506 = vmatprep.mubr.bf16.mxu0 0
        %507 = vmatmul.mubr.bf16.gmra.mrb[0].mxu0 %v465
        %v508 = vpop.f32.mrb[0].mxu0
        %v509 = vadd.f32 0.0, %v508
        %v510 = vpop.f32.mrb[0].mxu0
        %v511 = vpop.f32.mrb[0].mxu0
        %v512 = vpop.f32.mrb[0].mxu0
        %513 = vdwg.mxu0
        %v514 = vadd.f32 %v464, %v509
        %515 = vst.msk [vmem:[#allocation2] sm:$0xff] %vm389, %v514
        // Predicated region
        $region45: #{tpu_custom_call.1} parent=39 // pred_check
          %p516 = pneg %p326
        $region46: #{tpu_custom_call.1} parent=39 // pred_check_branch
          %518 = sbr.rel (%p516) target = $region48
        $region47: #{tpu_custom_call.1} parent=39 // pred_region
          %v519 = vld [vmem:[#allocation2] sm:$0xff]
          %v520 = vpack.c.bf16 %v519, %v519
          %v521 = vld [vmem:[%s324] sm:$0xf]
          %v522 = vld [vmem:[%s3] sm:$0xf]
          %v523 = vld [vmem:[%s3 + $0x4] sm:$0xf]
          %v524 = vld [vmem:[%s3 + $0x8] sm:$0xf]
          %v525 = vld [vmem:[%s3 + $0xc] sm:$0xf]
          %v526 = vld [vmem:[%s4] sm:$0xf]
          %v527 = vld [vmem:[%s4 + $0x4] sm:$0xf]
          %v528 = vld [vmem:[%s4 + $0x8] sm:$0xf]
          %v529 = vld [vmem:[%s4 + $0xc] sm:$0xf]
          %v534 = vunpack.c.l.b16 %v526
          %v535 = vunpack.c.l.b16 %v527
          %v536 = vunpack.c.l.b16 %v528
          %v537 = vunpack.c.l.b16 %v529
          %v538 = vpack.c.b16 %v535, %v534
          %v539 = vpack.c.b16 %v537, %v536
          %v543 = vsel %vm389, %v521, 0
          %545 = vmatprep.subr.bf16.mxu0 0
          %546 = vmatpush1.bf16.msra.mxu0 %v538
          %547 = vmatprep.subr.bf16.mxu0 0
          %548 = vmatpush1.bf16.msra.mxu0 %v539
          %549 = vmatprep.subr.bf16.mxu0 0
          %550 = vmatpush1.bf16.msra.mxu0 0
          %551 = vmatprep.subr.bf16.mxu0 0
          %552 = vmatpush1.bf16.msra.mxu0 0
          %553 = vmatprep.subr.bf16.mxu0 0
          %554 = vmatpush1.bf16.msra.mxu0 0
          %555 = vmatprep.subr.bf16.mxu0 0
          %556 = vmatpush1.bf16.msra.mxu0 0
          %557 = vmatprep.subr.bf16.mxu0 0
          %558 = vmatpush1.bf16.msra.mxu0 0
          %559 = vmatprep.subr.bf16.mxu0 0
          %560 = vmatpush1.bf16.msra.mxu0 0
          %561 = vmatprep.subr.bf16.mxu0 0
          %562 = vmatpush1.bf16.msra.mxu0 0
          %563 = vmatprep.subr.bf16.mxu0 0
          %564 = vmatpush1.bf16.msra.mxu0 0
          %565 = vmatprep.subr.bf16.mxu0 0
          %566 = vmatpush1.bf16.msra.mxu0 0
          %567 = vmatprep.subr.bf16.mxu0 0
          %568 = vmatpush1.bf16.msra.mxu0 0
          %569 = vmatprep.subr.bf16.mxu0 0
          %570 = vmatpush1.bf16.msra.mxu0 0
          %571 = vmatprep.subr.bf16.mxu0 0
          %572 = vmatpush1.bf16.msra.mxu0 0
          %573 = vmatprep.subr.bf16.mxu0 0
          %574 = vmatpush1.bf16.msra.mxu0 0
          %575 = vmatprep.subr.bf16.mxu0 0
          %576 = vmatpush1.bf16.msra.mxu0 0
          %577 = vmatprep.mubr.bf16.mxu0 0
          %578 = vmatmul.mubr.bf16.gmra.mrb[0].mxu0 %v543
          %v579 = vpop.f32.mrb[0].mxu0
          %v580 = vadd.f32 0.0, %v579
          %v581 = vpop.f32.mrb[0].mxu0
          %v582 = vpop.f32.mrb[0].mxu0
          %v583 = vpop.f32.mrb[0].mxu0
          %584 = vdwg.mxu0
          %v589 = vunpack.c.l.b16 %v522
          %v590 = vunpack.c.l.b16 %v523
          %v591 = vunpack.c.l.b16 %v524
          %v592 = vunpack.c.l.b16 %v525
          %v593 = vpack.c.b16 %v590, %v589
          %v594 = vpack.c.b16 %v592, %v591
          %v598 = vsel %vm389, %v520, 0
          %600 = vmatprep.subr.bf16.mxu0 0
          %601 = vmatpush1.bf16.msra.mxu0 %v593
          %602 = vmatprep.subr.bf16.mxu0 0
          %603 = vmatpush1.bf16.msra.mxu0 %v594
          %604 = vmatprep.subr.bf16.mxu0 0
          %605 = vmatpush1.bf16.msra.mxu0 0
          %606 = vmatprep.subr.bf16.mxu0 0
          %607 = vmatpush1.bf16.msra.mxu0 0
          %608 = vmatprep.subr.bf16.mxu0 0
          %609 = vmatpush1.bf16.msra.mxu0 0
          %610 = vmatprep.subr.bf16.mxu0 0
          %611 = vmatpush1.bf16.msra.mxu0 0
          %612 = vmatprep.subr.bf16.mxu0 0
          %613 = vmatpush1.bf16.msra.mxu0 0
          %614 = vmatprep.subr.bf16.mxu0 0
          %615 = vmatpush1.bf16.msra.mxu0 0
          %616 = vmatprep.subr.bf16.mxu0 0
          %617 = vmatpush1.bf16.msra.mxu0 0
          %618 = vmatprep.subr.bf16.mxu0 0
          %619 = vmatpush1.bf16.msra.mxu0 0
          %620 = vmatprep.subr.bf16.mxu0 0
          %621 = vmatpush1.bf16.msra.mxu0 0
          %622 = vmatprep.subr.bf16.mxu0 0
          %623 = vmatpush1.bf16.msra.mxu0 0
          %624 = vmatprep.subr.bf16.mxu0 0
          %625 = vmatpush1.bf16.msra.mxu0 0
          %626 = vmatprep.subr.bf16.mxu0 0
          %627 = vmatpush1.bf16.msra.mxu0 0
          %628 = vmatprep.subr.bf16.mxu0 0
          %629 = vmatpush1.bf16.msra.mxu0 0
          %630 = vmatprep.subr.bf16.mxu0 0
          %631 = vmatpush1.bf16.msra.mxu0 0
          %632 = vmatprep.mubr.bf16.mxu0 0
          %633 = vmatmul.mubr.bf16.gmra.mrb[0].mxu0 %v598
          %v634 = vpop.f32.mrb[0].mxu0
          %v635 = vadd.f32 %v580, %v634
          %v636 = vpop.f32.mrb[0].mxu0
          %v637 = vpop.f32.mrb[0].mxu0
          %v638 = vpop.f32.mrb[0].mxu0
          %639 = vdwg.mxu0
          %v640 = vtanh.pop %v635
          %641 = vst.msk [vmem:[%s299] sm:$0xff] %vm389, %v640
        $region48: #{tpu_custom_call.1} parent=39 // pred_fallthru
          _
        %s642 = sand.u32 %s166, 1
        %s643 = scalar_lea.sflag [#allocation4], %s642
        %s644 = sand.u32 %s166, 1
        %s645 = smul.addr %s644, 8
        %s646 = scalar_lea.vmem [#allocation3], %s645
        %s647 = sand.u32 %s194, 1
        %s648 = scalar_lea.sflag [#allocation6], %s647
        %s649 = sand.u32 %s194, 1
        %s650 = smul.addr %s649, 8
        %s651 = scalar_lea.vmem [#allocation5], %s650
        // Predicated region
        $region49: #{tpu_custom_call.1} parent=39 // pred_check
          %p652 = pneg %p176
        $region50: #{tpu_custom_call.1} parent=39 // pred_check_branch
          %654 = sbr.rel (%p652) target = $region52
        $region51: #{tpu_custom_call.1} parent=39 // pred_region
          %s656 = ssub.s32 128, 128
          %657 = vsyncadd %s643, %s656
          %s658 = smul.addr %s28, 128
          %s659 = scalar_lea.hbm %s5, %s658
          %s661 = sshll.u32 %s646, 4
          %s662 = int_to_ptr.vmem [resolvable:$true] %s661
          %664 = dma.vmem_to_hbm [thread:$0]  %s662, 128, %s659, %s643
        $region52: #{tpu_custom_call.1} parent=39 // pred_fallthru
          _
        // Predicated region
        $region53: #{tpu_custom_call.1} parent=39 // pred_check
          %p665 = pneg %p204
        $region54: #{tpu_custom_call.1} parent=39 // pred_check_branch
          %667 = sbr.rel (%p665) target = $region56
        $region55: #{tpu_custom_call.1} parent=39 // pred_region
          %s669 = ssub.s32 128, 128
          %670 = vsyncadd %s648, %s669
          %s671 = sadd.s32 %s29, %s28
          %s672 = smul.addr %s671, 128
          %s673 = scalar_lea.hbm %s6, %s672
          %s675 = sshll.u32 %s651, 4
          %s676 = int_to_ptr.vmem [resolvable:$true] %s675
          %678 = dma.vmem_to_hbm [thread:$0]  %s676, 128, %s673, %s648
        $region56: #{tpu_custom_call.1} parent=39 // pred_fallthru
          _
      $region40: #{tpu_custom_call.1} parent=5 // pred_fallthru
        _
      %p679 = scmp.le.s32.totalorder 2, %s19
      // Predicated region
      $region57: #{tpu_custom_call.1} parent=5 // pred_check
        %p680 = pneg %p679
      $region58: #{tpu_custom_call.1} parent=5 // pred_check_branch
        %682 = sbr.rel (%p680) target = $region60
      $region59: #{tpu_custom_call.1} parent=5 // pred_region
        %s683 = ssub.s32 %s19, 2
        // Predicated region
        $region61: #{tpu_custom_call.1} parent=59 // pred_check
          %p684 = pneg %p182
        $region62: #{tpu_custom_call.1} parent=59 // pred_check_branch
          %686 = sbr.rel (%p684) target = $region64
        $region63: #{tpu_custom_call.1} parent=59 // pred_region
          %s687 = sand.u32 %s167, 1
          %s688 = scalar_lea.sflag [#allocation4], %s687
          %s689 = sand.u32 %s167, 1
          %s690 = smul.addr %s689, 8
          %s691 = scalar_lea.vmem [#allocation3], %s690
          %692 = dma.done %s688, 128
        $region64: #{tpu_custom_call.1} parent=59 // pred_fallthru
          _
        // Predicated region
        $region65: #{tpu_custom_call.1} parent=59 // pred_check
          %p693 = pneg %p210
        $region66: #{tpu_custom_call.1} parent=59 // pred_check_branch
          %695 = sbr.rel (%p693) target = $region68
        $region67: #{tpu_custom_call.1} parent=59 // pred_region
          %s696 = sand.u32 %s195, 1
          %s697 = scalar_lea.sflag [#allocation6], %s696
          %s698 = sand.u32 %s195, 1
          %s699 = smul.addr %s698, 8
          %s700 = scalar_lea.vmem [#allocation5], %s699
          %701 = dma.done %s697, 128
        $region68: #{tpu_custom_call.1} parent=59 // pred_fallthru
          _
      $region60: #{tpu_custom_call.1} parent=5 // pred_fallthru
        _
    $region6: #{tpu_custom_call.1} parent=1 // loop_footer
      %s23 = sadd.s32 1, %s19
    $region7: #{tpu_custom_call.1} parent=1 // loop_footer_branch
      %18 = sbr.rel target = $region3
    $region8: #{tpu_custom_call.1} parent=1 // loop_exit
      _
    %702 = vsyncpa [#allocation4], 1
    %s703 = scalar_lea.sflag [#allocation4], 1
    %704 = vsyncpa %s703, 1
    %705 = vsyncpa [#allocation6], 1
    %s706 = scalar_lea.sflag [#allocation6], 1
    %707 = vsyncpa %s706, 1

</llo_original>
